<compile_context>
chip_gen: v7x
topology: tpu7x:2x2x1
jax: 0.10.0
libtpu: 0.0.40
codegen_flags: <defaults>
</compile_context>

<pallas_src>
import jax
import jax.numpy as jnp
from jax.experimental import pallas as pl
from jax.experimental.pallas import tpu as pltpu

# --- synthetic dims ---------------------------------------------------------
NUM_RB = 8
NUM_RU = 4
STATE_DIM = NUM_RU + NUM_RB      # 12
HIDDEN_DIM = 64
ACTION_DIM = NUM_RB              # 8

TB_CAP = 1024                    # max batch rows per grid step


def _round_up(n, m):
    return ((n + m - 1) // m) * m


def _cdiv(a, b):
    return -(-a // b)


def dqn_kernel(x_ref, w1_ref, b1_ref, w2_ref, b2_ref, o_ref):
    # First linear: bf16 MXU matmul, f32 accumulate.
    h = jnp.dot(x_ref[...], w1_ref[...],
                preferred_element_type=jnp.float32)            # (TB, HIDDEN) f32
    # Epilogue in f32 (v5e has no bf16 VPU).
    h = jnp.maximum(h + b1_ref[...], 0.0)
    # Second linear: cast to bf16 only for the MXU, accumulate f32.
    out = jnp.dot(h.astype(jnp.bfloat16), w2_ref[...],
                  preferred_element_type=jnp.float32)          # (TB, ACTION) f32
    o_ref[...] = (out + b2_ref[...]).astype(o_ref.dtype)


def dqn_forward(x, w1, b1, w2, b2):
    """x: (B, STATE_DIM) f32; bf16 weights / (1, dim) f32 biases from prep_params."""
    B = x.shape[0]

    # Adaptive batch tiling: keep padding to a few rows, cap TB at 1024, and
    # force >=2 tiles when B > 8 so v7x's two TensorCores both get work.
    B8 = _round_up(B, 8)
    n_tiles = max(1, _cdiv(B8, TB_CAP))
    if B8 > 8 and n_tiles < 2:
        n_tiles = 2
    TB = _round_up(_cdiv(B8, n_tiles), 8)
    B_pad = n_tiles * TB

    x = x.astype(jnp.bfloat16)                 # cast once; halves x DMA bytes
    if B_pad != B:
        x = jnp.pad(x, ((0, B_pad - B), (0, 0)))
    grid = (n_tiles,)

    out = pl.pallas_call(
        dqn_kernel,
        out_shape=jax.ShapeDtypeStruct((B_pad, ACTION_DIM), jnp.float32),
        grid=grid,
        in_specs=[
            pl.BlockSpec((TB, STATE_DIM), lambda i: (i, 0)),          # x tile (pipelined)
            pl.BlockSpec((STATE_DIM, HIDDEN_DIM), lambda i: (0, 0)),  # W1 resident
            pl.BlockSpec((1, HIDDEN_DIM), lambda i: (0, 0)),          # b1 resident
            pl.BlockSpec((HIDDEN_DIM, ACTION_DIM), lambda i: (0, 0)), # W2 resident
            pl.BlockSpec((1, ACTION_DIM), lambda i: (0, 0)),          # b2 resident
        ],
        out_specs=pl.BlockSpec((TB, ACTION_DIM), lambda i: (i, 0)),
        compiler_params=pltpu.CompilerParams(
            dimension_semantics=("parallel",)),
    )(x, w1, b1, w2, b2)

    return out[:B]


def init_params(key):
    """Deterministic init mimicking PyTorch nn.Linear default (uniform +-1/sqrt(fan_in))."""
    k1, k2, k3, k4 = jax.random.split(key, 4)
    bound1 = 1.0 / (STATE_DIM ** 0.5)
    bound2 = 1.0 / (HIDDEN_DIM ** 0.5)
    w1 = jax.random.uniform(k1, (STATE_DIM, HIDDEN_DIM), jnp.float32, -bound1, bound1)
    b1 = jax.random.uniform(k2, (HIDDEN_DIM,), jnp.float32, -bound1, bound1)
    w2 = jax.random.uniform(k3, (HIDDEN_DIM, ACTION_DIM), jnp.float32, -bound2, bound2)
    b2 = jax.random.uniform(k4, (ACTION_DIM,), jnp.float32, -bound2, bound2)
    return w1, b1, w2, b2


def prep_params(w1, b1, w2, b2):
    """Cast weights to bf16 for the MXU; biases stay f32, reshaped to (1, dim)."""
    return (w1.astype(jnp.bfloat16),
            b1.reshape(1, HIDDEN_DIM).astype(jnp.float32),
            w2.astype(jnp.bfloat16),
            b2.reshape(1, ACTION_DIM).astype(jnp.float32))


if __name__ == "__main__":
    key = jax.random.PRNGKey(0)
    k_x, k_p = jax.random.split(key)

    B = 2
    x = jax.random.normal(k_x, (B, STATE_DIM), jnp.float32)
    w1, b1, w2, b2 = init_params(k_p)
    w1b, b1b, w2b, b2b = prep_params(w1, b1, w2, b2)

    out = dqn_forward(x, w1b, b1b, w2b, b2b)
    out = jax.block_until_ready(out)

    # Pure-JAX reference with the same bf16-weight / f32-accumulate numerics.
    h_ref = jnp.dot(x.astype(jnp.bfloat16), w1.astype(jnp.bfloat16),
                    preferred_element_type=jnp.float32) + b1
    h_ref = jnp.maximum(h_ref, 0.0)
    ref = jnp.dot(h_ref.astype(jnp.bfloat16), w2.astype(jnp.bfloat16),
                  preferred_element_type=jnp.float32) + b2

    assert out.shape == (B, ACTION_DIM)
    assert jnp.allclose(out, ref, atol=1e-3, rtol=1e-3)

    print("KERNEL_OK")
</pallas_src>

<mosaic_0001>
module attributes {stable_mosaic.version = 11 : i64} {
  func.func @dqn_kernel(%arg0: i32, %arg1: memref<8x12xbf16, #tpu.memory_space<vmem>>, %arg2: memref<12x64xbf16, #tpu.memory_space<vmem>>, %arg3: memref<1x64xf32, #tpu.memory_space<vmem>>, %arg4: memref<64x8xbf16, #tpu.memory_space<vmem>>, %arg5: memref<1x8xf32, #tpu.memory_space<vmem>>, %arg6: memref<8x8xf32, #tpu.memory_space<vmem>>) attributes {dimension_semantics = [#tpu.dimension_semantics<parallel>], iteration_bounds = array<i64: 1>, scalar_prefetch = 0 : i64, scratch_operands = 0 : i64, tpu.core_type = #tpu.core_type<tc>, window_params = [{transform_indices = @transform_0, window_bounds = array<i64: 8, 12>}, {pipeline_mode = #tpu.pipeline_mode<synchronous>, transform_indices = @transform_1, window_bounds = array<i64: 12, 64>}, {pipeline_mode = #tpu.pipeline_mode<synchronous>, transform_indices = @transform_2, window_bounds = array<i64: 1, 64>}, {pipeline_mode = #tpu.pipeline_mode<synchronous>, transform_indices = @transform_3, window_bounds = array<i64: 64, 8>}, {pipeline_mode = #tpu.pipeline_mode<synchronous>, transform_indices = @transform_4, window_bounds = array<i64: 1, 8>}, {transform_indices = @transform_5, window_bounds = array<i64: 8, 8>}]} {
    %c0 = arith.constant 0 : index
    %c0_0 = arith.constant 0 : index
    %0 = vector.load %arg1[%c0, %c0_0] : memref<8x12xbf16, #tpu.memory_space<vmem>>, vector<8x12xbf16>
    %c0_1 = arith.constant 0 : index
    %c0_2 = arith.constant 0 : index
    %1 = vector.load %arg2[%c0_1, %c0_2] : memref<12x64xbf16, #tpu.memory_space<vmem>>, vector<12x64xbf16>
    %cst = arith.constant dense<0.000000e+00> : vector<8x64xf32>
    %2 = tpu.matmul %0, %1, %cst {dimension_numbers = #tpu.dot_dimension_numbers<[1], [0], [0], [1], [0, 0, 1, 1], [], []>} : vector<8x12xbf16>, vector<12x64xbf16>, vector<8x64xf32> -> vector<8x64xf32>
    %c0_3 = arith.constant 0 : index
    %c0_4 = arith.constant 0 : index
    %3 = vector.load %arg3[%c0_3, %c0_4] : memref<1x64xf32, #tpu.memory_space<vmem>>, vector<1x64xf32>
    %4 = vector.broadcast %3 : vector<1x64xf32> to vector<8x64xf32>
    %5 = arith.addf %2, %4 : vector<8x64xf32>
    %cst_5 = arith.constant 0.000000e+00 : f32
    %6 = vector.broadcast %cst_5 : f32 to vector<8x64xf32>
    %7 = arith.maximumf %5, %6 : vector<8x64xf32>
    %8 = arith.truncf %7 : vector<8x64xf32> to vector<8x64xbf16>
    %c0_6 = arith.constant 0 : index
    %c0_7 = arith.constant 0 : index
    %9 = vector.load %arg4[%c0_6, %c0_7] : memref<64x8xbf16, #tpu.memory_space<vmem>>, vector<64x8xbf16>
    %cst_8 = arith.constant dense<0.000000e+00> : vector<8x8xf32>
    %10 = tpu.matmul %8, %9, %cst_8 {dimension_numbers = #tpu.dot_dimension_numbers<[1], [0], [0], [1], [0, 0, 1, 1], [], []>} : vector<8x64xbf16>, vector<64x8xbf16>, vector<8x8xf32> -> vector<8x8xf32>
    %c0_9 = arith.constant 0 : index
    %c0_10 = arith.constant 0 : index
    %11 = vector.load %arg5[%c0_9, %c0_10] : memref<1x8xf32, #tpu.memory_space<vmem>>, vector<1x8xf32>
    %12 = vector.broadcast %11 : vector<1x8xf32> to vector<8x8xf32>
    %13 = arith.addf %10, %12 : vector<8x8xf32>
    %c0_11 = arith.constant 0 : index
    %c0_12 = arith.constant 0 : index
    %14 = vector.load %arg6[%c0_11, %c0_12] : memref<8x8xf32, #tpu.memory_space<vmem>>, vector<8x8xf32>
    tpu.vector_store %arg6[%c0_11, %c0_12], %13 {strides = array<i32>} : memref<8x8xf32, #tpu.memory_space<vmem>>, vector<8x8xf32>,
    return
  }
  func.func @transform_0(%arg0: i32) -> (i32, i32) {
    %c0_i32 = arith.constant 0 : i32
    %c0_i32_0 = arith.constant 0 : i32
    return %arg0, %c0_i32 : i32, i32
  }
  func.func @transform_1(%arg0: i32) -> (i32, i32) {
    %c0_i32 = arith.constant 0 : i32
    %c0_i32_0 = arith.constant 0 : i32
    %c0_i32_1 = arith.constant 0 : i32
    return %c0_i32, %c0_i32_0 : i32, i32
  }
  func.func @transform_2(%arg0: i32) -> (i32, i32) {
    %c0_i32 = arith.constant 0 : i32
    %c0_i32_0 = arith.constant 0 : i32
    %c0_i32_1 = arith.constant 0 : i32
    return %c0_i32, %c0_i32_0 : i32, i32
  }
  func.func @transform_3(%arg0: i32) -> (i32, i32) {
    %c0_i32 = arith.constant 0 : i32
    %c0_i32_0 = arith.constant 0 : i32
    %c0_i32_1 = arith.constant 0 : i32
    return %c0_i32, %c0_i32_0 : i32, i32
  }
  func.func @transform_4(%arg0: i32) -> (i32, i32) {
    %c0_i32 = arith.constant 0 : i32
    %c0_i32_0 = arith.constant 0 : i32
    %c0_i32_1 = arith.constant 0 : i32
    return %c0_i32, %c0_i32_0 : i32, i32
  }
  func.func @transform_5(%arg0: i32) -> (i32, i32) {
    %c0_i32 = arith.constant 0 : i32
    %c0_i32_0 = arith.constant 0 : i32
    return %arg0, %c0_i32 : i32, i32
  }
}

</mosaic_0001>

<llo_original>
// kernel: tpu_custom_call.1
$region0: #{tpu_custom_call.1}
  #allocation0 [shape = 'u32[]', space=smem, size = 0x4, offset = 0x4, fixed_abs, tag = 'smem constant byte address 0x4 - core index']
  #allocation1 [shape = 'u32[144,128]{1,0:T(1,128)}', space=vmem, size = 0x12000, scoped, tag = 'internal scratch']
  %s0 = inlined_call_operand.vmem [shape: bf16[8,12], index: 0, kind: input, shape index: {}]
  %s1 = inlined_call_operand.vmem [shape: bf16[12,64], index: 1, kind: input, shape index: {}]
  %s2 = inlined_call_operand.vmem [shape: f32[1,64], index: 2, kind: input, shape index: {}]
  %s3 = inlined_call_operand.vmem [shape: bf16[64,8], index: 3, kind: input, shape index: {}]
  %s4 = inlined_call_operand.vmem [shape: f32[1,8], index: 4, kind: input, shape index: {}]
  %s5 = inlined_call_operand.hbm [shape: f32[8,8], index: 5, kind: output, shape index: {}]
  %s6 = sld [smem:[#allocation0]]
  $region30: #{tpu_custom_call.1} parent=0
    _
  %s8 = ssub.s32 1, %s6
  %s9 = scalar_select 0, %s8, %s6
  $region1: #{tpu_custom_call.1} parent=0
    #allocation2 [shape = 'u8[4096]{0}', space=vmem, size = 0x1000, scoped, tag = 'output window, operand 0, single buffered']
    #allocation3 [shape = 's32[1]{0}', space=sflag, size = 0x4, scoped, tag = 'scoped memory for tpu_custom_call.1']
    %10 = vsyncpa [#allocation3], 0
    // Predicated region
    $region2: #{tpu_custom_call.1} parent=1 // pred_check
      _
    $region3: #{tpu_custom_call.1} parent=1 // pred_check_branch
      %12 = sbr.rel (0) target = $region5
    $region4: #{tpu_custom_call.1} parent=1 // pred_region
      _
    $region5: #{tpu_custom_call.1} parent=1 // pred_fallthru
      _
    // Predicated region
    $region6: #{tpu_custom_call.1} parent=1 // pred_check
      _
    $region7: #{tpu_custom_call.1} parent=1 // pred_check_branch
      %14 = sbr.rel (0) target = $region9
    $region8: #{tpu_custom_call.1} parent=1 // pred_region
      _
    $region9: #{tpu_custom_call.1} parent=1 // pred_fallthru
      _
    // Predicated region
    $region10: #{tpu_custom_call.1} parent=1 // pred_check
      _
    $region11: #{tpu_custom_call.1} parent=1 // pred_check_branch
      %16 = sbr.rel (0) target = $region13
    $region12: #{tpu_custom_call.1} parent=1 // pred_region
      _
    $region13: #{tpu_custom_call.1} parent=1 // pred_fallthru
      _
    // Predicated region
    $region14: #{tpu_custom_call.1} parent=1 // pred_check
      _
    $region15: #{tpu_custom_call.1} parent=1 // pred_check_branch
      %18 = sbr.rel (0) target = $region17
    $region16: #{tpu_custom_call.1} parent=1 // pred_region
      _
    $region17: #{tpu_custom_call.1} parent=1 // pred_fallthru
      _
    // Predicated region
    $region18: #{tpu_custom_call.1} parent=1 // pred_check
      _
    $region19: #{tpu_custom_call.1} parent=1 // pred_check_branch
      %20 = sbr.rel (0) target = $region21
    $region20: #{tpu_custom_call.1} parent=1 // pred_region
      _
    $region21: #{tpu_custom_call.1} parent=1 // pred_fallthru
      _
    %v22 = vld [vmem:[%s0] sm:$0xf]
    %v23 = vld [vmem:[%s1] sm:$0xf]
    %v24 = vld [vmem:[%s1 + $0x4] sm:$0x3]
    %v25 = vld [vmem:[%s2] sm:$0x1]
    %v27 = vlaneseq
    %v28 = vshrl.u32 %v27, 7
    %v29 = vsub.s32 0, %v28
    %v30 = vrot.slane %v25, %v29
    %v34 = vunpack.c.l.b16 %v23
    %v35 = vunpack.c.l.b16 %v24
    %v36 = vpack.c.b16 %v35, %v34
    %vm37 = vcmask 97280
    %v39 = vsel %vm37, %v22, 0
    %vm41 = vcmask 1045504
    %v43 = vsel %vm41, %v36, 0
    %45 = vmatprep.subr.bf16.mxu0 0
    %46 = vmatpush1.bf16.msra.mxu0 %v43
    %47 = vmatprep.subr.bf16.mxu0 0
    %48 = vmatpush1.bf16.msra.mxu0 0
    %49 = vmatprep.subr.bf16.mxu0 0
    %50 = vmatpush1.bf16.msra.mxu0 0
    %51 = vmatprep.subr.bf16.mxu0 0
    %52 = vmatpush1.bf16.msra.mxu0 0
    %53 = vmatprep.subr.bf16.mxu0 0
    %54 = vmatpush1.bf16.msra.mxu0 0
    %55 = vmatprep.subr.bf16.mxu0 0
    %56 = vmatpush1.bf16.msra.mxu0 0
    %57 = vmatprep.subr.bf16.mxu0 0
    %58 = vmatpush1.bf16.msra.mxu0 0
    %59 = vmatprep.subr.bf16.mxu0 0
    %60 = vmatpush1.bf16.msra.mxu0 0
    %61 = vmatprep.subr.bf16.mxu0 0
    %62 = vmatpush1.bf16.msra.mxu0 0
    %63 = vmatprep.subr.bf16.mxu0 0
    %64 = vmatpush1.bf16.msra.mxu0 0
    %65 = vmatprep.subr.bf16.mxu0 0
    %66 = vmatpush1.bf16.msra.mxu0 0
    %67 = vmatprep.subr.bf16.mxu0 0
    %68 = vmatpush1.bf16.msra.mxu0 0
    %69 = vmatprep.subr.bf16.mxu0 0
    %70 = vmatpush1.bf16.msra.mxu0 0
    %71 = vmatprep.subr.bf16.mxu0 0
    %72 = vmatpush1.bf16.msra.mxu0 0
    %73 = vmatprep.subr.bf16.mxu0 0
    %74 = vmatpush1.bf16.msra.mxu0 0
    %75 = vmatprep.subr.bf16.mxu0 0
    %76 = vmatpush1.bf16.msra.mxu0 0
    %77 = vmatprep.mubr.bf16.mxu0 0
    %78 = vmatmul.mubr.bf16.gmra.mrb[0].mxu0 %v39
    %v79 = vpop.f32.mrb[0].mxu0
    %v80 = vadd.f32 %v30, %v79
    %v81 = vpop.f32.mrb[0].mxu0
    %v82 = vpop.f32.mrb[0].mxu0
    %v83 = vpop.f32.mrb[0].mxu0
    %84 = vdwg.mxu0
    %v85 = vmax.f32 %v80, 0.0
    %v86 = vpack.c.bf16 %v85, %v85
    %v87 = vld [vmem:[%s3] sm:$0xf]
    %v88 = vld [vmem:[%s3 + $0x4] sm:$0xf]
    %v89 = vld [vmem:[%s3 + $0x8] sm:$0xf]
    %v90 = vld [vmem:[%s3 + $0xc] sm:$0xf]
    %v91 = vld [vmem:[%s3 + $0x10] sm:$0xf]
    %v92 = vld [vmem:[%s3 + $0x14] sm:$0xf]
    %v93 = vld [vmem:[%s3 + $0x18] sm:$0xf]
    %v94 = vld [vmem:[%s3 + $0x1c] sm:$0xf]
    %v95 = vld [vmem:[%s4] sm:$0x1]
    %v97 = vlaneseq
    %v98 = vshrl.u32 %v97, 7
    %v99 = vsub.s32 0, %v98
    %v100 = vrot.slane %v95, %v99
    %v110 = vunpack.c.l.b16 %v87
    %v111 = vunpack.c.l.b16 %v88
    %v112 = vunpack.c.l.b16 %v89
    %v113 = vunpack.c.l.b16 %v90
    %v114 = vunpack.c.l.b16 %v91
    %v115 = vunpack.c.l.b16 %v92
    %v116 = vunpack.c.l.b16 %v93
    %v117 = vunpack.c.l.b16 %v94
    %v118 = vpack.c.b16 %v111, %v110
    %v119 = vpack.c.b16 %v113, %v112
    %v120 = vpack.c.b16 %v115, %v114
    %v121 = vpack.c.b16 %v117, %v116
    %vm126 = vcmask 523264
    %v128 = vsel %vm126, %v86, 0
    %130 = vmatprep.subr.bf16.mxu0 0
    %131 = vmatpush1.bf16.msra.mxu0 %v118
    %132 = vmatprep.subr.bf16.mxu0 0
    %133 = vmatpush1.bf16.msra.mxu0 %v119
    %134 = vmatprep.subr.bf16.mxu0 0
    %135 = vmatpush1.bf16.msra.mxu0 %v120
    %136 = vmatprep.subr.bf16.mxu0 0
    %137 = vmatpush1.bf16.msra.mxu0 %v121
    %138 = vmatprep.subr.bf16.mxu0 0
    %139 = vmatpush1.bf16.msra.mxu0 0
    %140 = vmatprep.subr.bf16.mxu0 0
    %141 = vmatpush1.bf16.msra.mxu0 0
    %142 = vmatprep.subr.bf16.mxu0 0
    %143 = vmatpush1.bf16.msra.mxu0 0
    %144 = vmatprep.subr.bf16.mxu0 0
    %145 = vmatpush1.bf16.msra.mxu0 0
    %146 = vmatprep.subr.bf16.mxu0 0
    %147 = vmatpush1.bf16.msra.mxu0 0
    %148 = vmatprep.subr.bf16.mxu0 0
    %149 = vmatpush1.bf16.msra.mxu0 0
    %150 = vmatprep.subr.bf16.mxu0 0
    %151 = vmatpush1.bf16.msra.mxu0 0
    %152 = vmatprep.subr.bf16.mxu0 0
    %153 = vmatpush1.bf16.msra.mxu0 0
    %154 = vmatprep.subr.bf16.mxu0 0
    %155 = vmatpush1.bf16.msra.mxu0 0
    %156 = vmatprep.subr.bf16.mxu0 0
    %157 = vmatpush1.bf16.msra.mxu0 0
    %158 = vmatprep.subr.bf16.mxu0 0
    %159 = vmatpush1.bf16.msra.mxu0 0
    %160 = vmatprep.subr.bf16.mxu0 0
    %161 = vmatpush1.bf16.msra.mxu0 0
    %162 = vmatprep.mubr.bf16.mxu0 0
    %163 = vmatmul.mubr.bf16.gmra.mrb[0].mxu0 %v128
    %v164 = vpop.f32.mrb[0].mxu0
    %v165 = vadd.f32 %v100, %v164
    %v166 = vpop.f32.mrb[0].mxu0
    %v167 = vpop.f32.mrb[0].mxu0
    %v168 = vpop.f32.mrb[0].mxu0
    %169 = vdwg.mxu0
    %vm170 = vcmask 64512
    %171 = vst.msk [vmem:[#allocation2] sm:$0xff] %vm170, %v165
    // Predicated region
    $region22: #{tpu_custom_call.1} parent=1 // pred_check
      _
    $region23: #{tpu_custom_call.1} parent=1 // pred_check_branch
      %173 = sbr.rel (0) target = $region25
    $region24: #{tpu_custom_call.1} parent=1 // pred_region
      %s175 = ssub.s32 128, 128
      %176 = vsyncadd [#allocation3], %s175
      %s178 = sshll.u32 [#allocation2], 4
      %s179 = int_to_ptr.vmem [resolvable:$true] %s178
      %181 = dma.vmem_to_hbm [thread:$0]  %s179, 128, %s5, [#allocation3]
    $region25: #{tpu_custom_call.1} parent=1 // pred_fallthru
      _
    // Predicated region
    $region26: #{tpu_custom_call.1} parent=1 // pred_check
      _
    $region27: #{tpu_custom_call.1} parent=1 // pred_check_branch
      %183 = sbr.rel (0) target = $region29
    $region28: #{tpu_custom_call.1} parent=1 // pred_region
      %184 = dma.done [#allocation3], 128
    $region29: #{tpu_custom_call.1} parent=1 // pred_fallthru
      _
    %185 = vsyncpa [#allocation3], 1

</llo_original>
